<compile_context>
chip_gen: v7x
topology: tpu7x:2x2x1
jax: 0.10.0
libtpu: 0.0.40
codegen_flags: <defaults>
</compile_context>

<pallas_src>
import jax
import jax.numpy as jnp
from jax.experimental import pallas as pl
from jax.experimental.pallas import tpu as pltpu


def _round_up(x, m):
    return ((x + m - 1) // m) * m


# ----------------------------------------------------------------- kernel ---
def _mlp_kernel(x_ref, w1_ref, b1_ref, w2_ref, b2_ref, o_ref):
    # x_ref:  (bm, D_in)  [compute dtype]    w1_ref: (D_in, H)  b1_ref: (1, H) f32
    # w2_ref: (H, N)                         b2_ref: (1, N) f32 o_ref:  (bm, N)
    h = jnp.dot(x_ref[...], w1_ref[...], preferred_element_type=jnp.float32)
    h = jnp.maximum(h + b1_ref[...], 0.0)                    # bias + ReLU in f32
    h = h.astype(w2_ref.dtype)                               # bf16 for 2nd MXU pass
    out = jnp.dot(h, w2_ref[...], preferred_element_type=jnp.float32)
    o_ref[...] = (out + b2_ref[...]).astype(o_ref.dtype)


# ------------------------------------------------------------ tile chooser ---
def _choose_bm(batch, bm_target, align=16):
    """Sublane-aligned batch tile; >=2 grid steps when possible; low tail waste."""
    bm = _round_up(min(bm_target, max(batch, 1)), align)
    # Keep at least 2 grid steps so the parallel axis can feed both TensorCores.
    if pl.cdiv(batch, bm) < 2 and batch > align:
        bm = max(align, _round_up(pl.cdiv(batch, 2), align))
    # Reduce padded-tail waste among aligned candidates >= bm_target // 2.
    best, best_pad = bm, _round_up(batch, bm) - batch
    lo = max(align, min(bm, bm_target // 2))
    cand = bm - align
    while cand >= lo:
        pad = _round_up(batch, cand) - batch
        if pad < best_pad:
            best, best_pad = cand, pad
        cand -= align
    return best


# ---------------------------------------------------------------- wrapper ---
def projection_head_pallas(x, w1, b1, w2, b2, *, bm=256,
                           compute_dtype=jnp.bfloat16,
                           out_dtype=jnp.float32):
    """Fused Projection_Head forward.

    x : (..., D_in)
    w1: (D_in, H)   b1: (H,)     -- first Linear, weight pre-transposed (in, out)
    w2: (H, N)      b2: (N,)     -- second Linear, weight pre-transposed (in, out)
    returns (..., N) in out_dtype
    """
    d_in = x.shape[-1]
    h_dim = w1.shape[1]
    n_out = w2.shape[1]
    lead = x.shape[:-1]

    x2 = x.reshape(-1, d_in).astype(compute_dtype)
    batch = x2.shape[0]

    bm = _choose_bm(batch, bm)
    batch_p = _round_up(batch, bm)
    if batch_p != batch:
        x2 = jnp.pad(x2, ((0, batch_p - batch), (0, 0)))

    w1c = w1.astype(compute_dtype)
    w2c = w2.astype(compute_dtype)
    b1r = b1.reshape(1, h_dim).astype(jnp.float32)
    b2r = b2.reshape(1, n_out).astype(jnp.float32)

    # ---- cost estimate (hint for XLA scheduling around the custom call) ----
    itm = jnp.dtype(compute_dtype).itemsize
    flops = 2 * batch_p * (d_in * h_dim + h_dim * n_out)
    bytes_accessed = (batch_p * d_in * itm
                      + (d_in * h_dim + h_dim * n_out) * itm
                      + (h_dim + n_out) * 4
                      + batch_p * n_out * jnp.dtype(out_dtype).itemsize)
    cost = pl.CostEstimate(flops=flops, transcendentals=0,
                           bytes_accessed=int(bytes_accessed))

    # ---- per-step VMEM footprint -> scoped limit with headroom ------------
    est_vmem = (2 * bm * d_in * itm                                  # x (2 bufs)
                + 2 * bm * n_out * jnp.dtype(out_dtype).itemsize     # out (2 bufs)
                + (d_in * h_dim + h_dim * n_out) * itm               # weights
                + (h_dim + n_out) * 4                                # biases
                + 2 * bm * h_dim * 4)                                # h intermediate
    vmem_limit = int(min(max(2 * est_vmem, 32 * (1 << 20)), 100 * (1 << 20)))

    grid = (batch_p // bm,)
    x_spec = pl.BlockSpec((bm, d_in), lambda i: (i, 0))
    o_spec = pl.BlockSpec((bm, n_out), lambda i: (i, 0))

    def _resident_spec(shape, single_buffer):
        # Constant index_map -> block DMA'd once and kept resident in VMEM.
        if single_buffer:
            return pl.BlockSpec(shape, lambda i: (0, 0),
                                pipeline_mode=pl.Buffered(1))
        return pl.BlockSpec(shape, lambda i: (0, 0))

    def _run(single_buffer_weights):
        in_specs = [
            x_spec,
            _resident_spec((d_in, h_dim), single_buffer_weights),   # W1
            _resident_spec((1, h_dim), single_buffer_weights),      # b1
            _resident_spec((h_dim, n_out), single_buffer_weights),  # W2
            _resident_spec((1, n_out), single_buffer_weights),      # b2
        ]
        return pl.pallas_call(
            _mlp_kernel,
            out_shape=jax.ShapeDtypeStruct((batch_p, n_out), out_dtype),
            grid=grid,
            in_specs=in_specs,
            out_specs=o_spec,
            cost_estimate=cost,
            compiler_params=pltpu.CompilerParams(
                dimension_semantics=("parallel",),
                vmem_limit_bytes=vmem_limit),
        )(x2, w1c, b1r, w2c, b2r)

    try:
        out = _run(True)          # single-buffered resident weights
    except Exception:
        out = _run(False)         # fallback: default double-buffering

    out = out[:batch]
    return out.reshape(*lead, n_out)


# ------------------------------------------------------- pure-JAX reference --
def projection_head_ref(x, w1, b1, w2, b2):
    h = jnp.maximum(x @ w1 + b1, 0.0)
    return h @ w2 + b2


# ------------------------------------------------------------- param init ---
def init_params(key, d_in, h_dim, n_out):
    """PyTorch-style Linear init, weights stored pre-transposed as (in, out)."""
    k1, k2, k3, k4 = jax.random.split(key, 4)
    r1 = 1.0 / jnp.sqrt(d_in)
    r2 = 1.0 / jnp.sqrt(h_dim)
    w1 = jax.random.uniform(k1, (d_in, h_dim), jnp.float32, -r1, r1)
    b1 = jax.random.uniform(k2, (h_dim,), jnp.float32, -r1, r1)
    w2 = jax.random.uniform(k3, (h_dim, n_out), jnp.float32, -r2, r2)
    b2 = jax.random.uniform(k4, (n_out,), jnp.float32, -r2, r2)
    return w1, b1, w2, b2


# -------------------------------------------------------------------- main ---
if __name__ == "__main__":
    # Small shapes consistent with the module (scaled-down 1024/256/2048).
    D_IN, H, N_OUT = 256, 128, 512
    key = jax.random.PRNGKey(0)
    kx1, kx2, kp = jax.random.split(key, 3)

    w1, b1, w2, b2 = init_params(kp, D_IN, H, N_OUT)

    ok = True

    # Case 1: ragged small batch (padding path, single grid step), f32 compute
    # -> tight numerical check against the reference.
    x_a = jax.random.normal(kx1, (10, D_IN), jnp.float32)
    out_a = jax.block_until_ready(
        projection_head_pallas(x_a, w1, b1, w2, b2, compute_dtype=jnp.float32))
    ref_a = projection_head_ref(x_a, w1, b1, w2, b2)
    ok &= out_a.shape == (10, N_OUT)
    ok &= bool(jnp.all(jnp.isfinite(out_a)))
    ok &= bool(jnp.allclose(out_a, ref_a, atol=1e-4, rtol=1e-4))

    # Case 2: larger batch (multi-step grid, tail-aware bm -> 192, megacore),
    # bf16 operands with f32 accumulation -> loose tolerance vs f32 reference.
    x_b = jax.random.normal(kx2, (384, D_IN), jnp.float32)
    out_b = jax.block_until_ready(
        projection_head_pallas(x_b, w1, b1, w2, b2))          # default bf16
    ref_b = projection_head_ref(x_b, w1, b1, w2, b2)
    ok &= out_b.shape == (384, N_OUT)
    ok &= bool(jnp.all(jnp.isfinite(out_b)))
    ok &= bool(jnp.allclose(out_b.astype(jnp.float32), ref_b,
                            atol=5e-2, rtol=5e-2))

    assert ok, (
        f"max abs diff A={float(jnp.max(jnp.abs(out_a - ref_a)))}, "
        f"B={float(jnp.max(jnp.abs(out_b.astype(jnp.float32) - ref_b)))}"
    )
    print("KERNEL_OK")
</pallas_src>

<mosaic_0001>
module attributes {stable_mosaic.version = 11 : i64} {
  func.func @_mlp_kernel(%arg0: i32, %arg1: memref<16x256xf32, #tpu.memory_space<vmem>>, %arg2: memref<256x128xf32, #tpu.memory_space<vmem>>, %arg3: memref<1x128xf32, #tpu.memory_space<vmem>>, %arg4: memref<128x512xf32, #tpu.memory_space<vmem>>, %arg5: memref<1x512xf32, #tpu.memory_space<vmem>>, %arg6: memref<16x512xf32, #tpu.memory_space<vmem>>) attributes {dimension_semantics = [#tpu.dimension_semantics<parallel>], iteration_bounds = array<i64: 1>, scalar_prefetch = 0 : i64, scratch_operands = 0 : i64, tpu.core_type = #tpu.core_type<tc>, window_params = [{transform_indices = @transform_0, window_bounds = array<i64: 16, 256>}, {pipeline_mode = #tpu.pipeline_mode<synchronous>, transform_indices = @transform_1, window_bounds = array<i64: 256, 128>}, {pipeline_mode = #tpu.pipeline_mode<synchronous>, transform_indices = @transform_2, window_bounds = array<i64: 1, 128>}, {pipeline_mode = #tpu.pipeline_mode<synchronous>, transform_indices = @transform_3, window_bounds = array<i64: 128, 512>}, {pipeline_mode = #tpu.pipeline_mode<synchronous>, transform_indices = @transform_4, window_bounds = array<i64: 1, 512>}, {transform_indices = @transform_5, window_bounds = array<i64: 16, 512>}]} {
    %c0 = arith.constant 0 : index
    %c0_0 = arith.constant 0 : index
    %0 = vector.load %arg1[%c0, %c0_0] : memref<16x256xf32, #tpu.memory_space<vmem>>, vector<16x256xf32>
    %c0_1 = arith.constant 0 : index
    %c0_2 = arith.constant 0 : index
    %1 = vector.load %arg2[%c0_1, %c0_2] : memref<256x128xf32, #tpu.memory_space<vmem>>, vector<256x128xf32>
    %cst = arith.constant dense<0.000000e+00> : vector<16x128xf32>
    %2 = tpu.matmul %0, %1, %cst {dimension_numbers = #tpu.dot_dimension_numbers<[1], [0], [0], [1], [0, 0, 1, 1], [], []>} : vector<16x256xf32>, vector<256x128xf32>, vector<16x128xf32> -> vector<16x128xf32>
    %c0_3 = arith.constant 0 : index
    %c0_4 = arith.constant 0 : index
    %3 = vector.load %arg3[%c0_3, %c0_4] : memref<1x128xf32, #tpu.memory_space<vmem>>, vector<1x128xf32>
    %4 = vector.broadcast %3 : vector<1x128xf32> to vector<16x128xf32>
    %5 = arith.addf %2, %4 : vector<16x128xf32>
    %cst_5 = arith.constant 0.000000e+00 : f32
    %6 = vector.broadcast %cst_5 : f32 to vector<16x128xf32>
    %7 = arith.maximumf %5, %6 : vector<16x128xf32>
    %c0_6 = arith.constant 0 : index
    %c0_7 = arith.constant 0 : index
    %8 = vector.load %arg4[%c0_6, %c0_7] : memref<128x512xf32, #tpu.memory_space<vmem>>, vector<128x512xf32>
    %cst_8 = arith.constant dense<0.000000e+00> : vector<16x512xf32>
    %9 = tpu.matmul %7, %8, %cst_8 {dimension_numbers = #tpu.dot_dimension_numbers<[1], [0], [0], [1], [0, 0, 1, 1], [], []>} : vector<16x128xf32>, vector<128x512xf32>, vector<16x512xf32> -> vector<16x512xf32>
    %c0_9 = arith.constant 0 : index
    %c0_10 = arith.constant 0 : index
    %10 = vector.load %arg5[%c0_9, %c0_10] : memref<1x512xf32, #tpu.memory_space<vmem>>, vector<1x512xf32>
    %11 = vector.broadcast %10 : vector<1x512xf32> to vector<16x512xf32>
    %12 = arith.addf %9, %11 : vector<16x512xf32>
    %c0_11 = arith.constant 0 : index
    %c0_12 = arith.constant 0 : index
    %13 = vector.load %arg6[%c0_11, %c0_12] : memref<16x512xf32, #tpu.memory_space<vmem>>, vector<16x512xf32>
    tpu.vector_store %arg6[%c0_11, %c0_12], %12 {strides = array<i32>} : memref<16x512xf32, #tpu.memory_space<vmem>>, vector<16x512xf32>,
    return
  }
  func.func @transform_0(%arg0: i32) -> (i32, i32) {
    %c0_i32 = arith.constant 0 : i32
    %c0_i32_0 = arith.constant 0 : i32
    return %arg0, %c0_i32 : i32, i32
  }
  func.func @transform_1(%arg0: i32) -> (i32, i32) {
    %c0_i32 = arith.constant 0 : i32
    %c0_i32_0 = arith.constant 0 : i32
    %c0_i32_1 = arith.constant 0 : i32
    return %c0_i32, %c0_i32_0 : i32, i32
  }
  func.func @transform_2(%arg0: i32) -> (i32, i32) {
    %c0_i32 = arith.constant 0 : i32
    %c0_i32_0 = arith.constant 0 : i32
    %c0_i32_1 = arith.constant 0 : i32
    return %c0_i32, %c0_i32_0 : i32, i32
  }
  func.func @transform_3(%arg0: i32) -> (i32, i32) {
    %c0_i32 = arith.constant 0 : i32
    %c0_i32_0 = arith.constant 0 : i32
    %c0_i32_1 = arith.constant 0 : i32
    return %c0_i32, %c0_i32_0 : i32, i32
  }
  func.func @transform_4(%arg0: i32) -> (i32, i32) {
    %c0_i32 = arith.constant 0 : i32
    %c0_i32_0 = arith.constant 0 : i32
    %c0_i32_1 = arith.constant 0 : i32
    return %c0_i32, %c0_i32_0 : i32, i32
  }
  func.func @transform_5(%arg0: i32) -> (i32, i32) {
    %c0_i32 = arith.constant 0 : i32
    %c0_i32_0 = arith.constant 0 : i32
    return %arg0, %c0_i32 : i32, i32
  }
}

module attributes {stable_mosaic.version = 11 : i64} {
  func.func @_mlp_kernel(%arg0: i32, %arg1: memref<16x256xf32, #tpu.memory_space<vmem>>, %arg2: memref<256x128xf32, #tpu.memory_space<vmem>>, %arg3: memref<1x128xf32, #tpu.memory_space<vmem>>, %arg4: memref<128x512xf32, #tpu.memory_space<vmem>>, %arg5: memref<1x512xf32, #tpu.memory_space<vmem>>, %arg6: memref<16x512xf32, #tpu.memory_space<vmem>>) attributes {dimension_semantics = [#tpu.dimension_semantics<parallel>], iteration_bounds = array<i64: 1>, scalar_prefetch = 0 : i64, scratch_operands = 0 : i64, tpu.core_type = #tpu.core_type<tc>, window_params = [{transform_indices = @transform_0, window_bounds = array<i64: 16, 256>}, {pipeline_mode = #tpu.pipeline_mode<synchronous>, transform_indices = @transform_1, window_bounds = array<i64: 256, 128>}, {pipeline_mode = #tpu.pipeline_mode<synchronous>, transform_indices = @transform_2, window_bounds = array<i64: 1, 128>}, {pipeline_mode = #tpu.pipeline_mode<synchronous>, transform_indices = @transform_3, window_bounds = array<i64: 128, 512>}, {pipeline_mode = #tpu.pipeline_mode<synchronous>, transform_indices = @transform_4, window_bounds = array<i64: 1, 512>}, {transform_indices = @transform_5, window_bounds = array<i64: 16, 512>}]} {
    %c0 = arith.constant 0 : index
    %c0_0 = arith.constant 0 : index
    %0 = vector.load %arg1[%c0, %c0_0] : memref<16x256xf32, #tpu.memory_space<vmem>>, vector<16x256xf32>
    %c0_1 = arith.constant 0 : index
    %c0_2 = arith.constant 0 : index
    %1 = vector.load %arg2[%c0_1, %c0_2] : memref<256x128xf32, #tpu.memory_space<vmem>>, vector<256x128xf32>
    %cst = arith.constant dense<0.000000e+00> : vector<16x128xf32>
    %2 = tpu.matmul %0, %1, %cst {dimension_numbers = #tpu.dot_dimension_numbers<[1], [0], [0], [1], [0, 0, 1, 1], [], []>} : vector<16x256xf32>, vector<256x128xf32>, vector<16x128xf32> -> vector<16x128xf32>
    %c0_3 = arith.constant 0 : index
    %c0_4 = arith.constant 0 : index
    %3 = vector.load %arg3[%c0_3, %c0_4] : memref<1x128xf32, #tpu.memory_space<vmem>>, vector<1x128xf32>
    %4 = vector.broadcast %3 : vector<1x128xf32> to vector<16x128xf32>
    %5 = arith.addf %2, %4 : vector<16x128xf32>
    %cst_5 = arith.constant 0.000000e+00 : f32
    %6 = vector.broadcast %cst_5 : f32 to vector<16x128xf32>
    %7 = arith.maximumf %5, %6 : vector<16x128xf32>
    %c0_6 = arith.constant 0 : index
    %c0_7 = arith.constant 0 : index
    %8 = vector.load %arg4[%c0_6, %c0_7] : memref<128x512xf32, #tpu.memory_space<vmem>>, vector<128x512xf32>
    %cst_8 = arith.constant dense<0.000000e+00> : vector<16x512xf32>
    %9 = tpu.matmul %7, %8, %cst_8 {dimension_numbers = #tpu.dot_dimension_numbers<[1], [0], [0], [1], [0, 0, 1, 1], [], []>} : vector<16x128xf32>, vector<128x512xf32>, vector<16x512xf32> -> vector<16x512xf32>
    %c0_9 = arith.constant 0 : index
    %c0_10 = arith.constant 0 : index
    %10 = vector.load %arg5[%c0_9, %c0_10] : memref<1x512xf32, #tpu.memory_space<vmem>>, vector<1x512xf32>
    %11 = vector.broadcast %10 : vector<1x512xf32> to vector<16x512xf32>
    %12 = arith.addf %9, %11 : vector<16x512xf32>
    %c0_11 = arith.constant 0 : index
    %c0_12 = arith.constant 0 : index
    %13 = vector.load %arg6[%c0_11, %c0_12] : memref<16x512xf32, #tpu.memory_space<vmem>>, vector<16x512xf32>
    tpu.vector_store %arg6[%c0_11, %c0_12], %12 {strides = array<i32>} : memref<16x512xf32, #tpu.memory_space<vmem>>, vector<16x512xf32>,
    return
  }
  func.func @transform_0(%arg0: i32) -> (i32, i32) {
    %c0_i32 = arith.constant 0 : i32
    %c0_i32_0 = arith.constant 0 : i32
    return %arg0, %c0_i32 : i32, i32
  }
  func.func @transform_1(%arg0: i32) -> (i32, i32) {
    %c0_i32 = arith.constant 0 : i32
    %c0_i32_0 = arith.constant 0 : i32
    %c0_i32_1 = arith.constant 0 : i32
    return %c0_i32, %c0_i32_0 : i32, i32
  }
  func.func @transform_2(%arg0: i32) -> (i32, i32) {
    %c0_i32 = arith.constant 0 : i32
    %c0_i32_0 = arith.constant 0 : i32
    %c0_i32_1 = arith.constant 0 : i32
    return %c0_i32, %c0_i32_0 : i32, i32
  }
  func.func @transform_3(%arg0: i32) -> (i32, i32) {
    %c0_i32 = arith.constant 0 : i32
    %c0_i32_0 = arith.constant 0 : i32
    %c0_i32_1 = arith.constant 0 : i32
    return %c0_i32, %c0_i32_0 : i32, i32
  }
  func.func @transform_4(%arg0: i32) -> (i32, i32) {
    %c0_i32 = arith.constant 0 : i32
    %c0_i32_0 = arith.constant 0 : i32
    %c0_i32_1 = arith.constant 0 : i32
    return %c0_i32, %c0_i32_0 : i32, i32
  }
  func.func @transform_5(%arg0: i32) -> (i32, i32) {
    %c0_i32 = arith.constant 0 : i32
    %c0_i32_0 = arith.constant 0 : i32
    return %arg0, %c0_i32 : i32, i32
  }
}

</mosaic_0001>

<llo_original>
// kernel: tpu_custom_call.1
$region0: #{tpu_custom_call.1}
  #allocation0 [shape = 'u32[]', space=smem, size = 0x4, offset = 0x4, fixed_abs, tag = 'smem constant byte address 0x4 - core index']
  #allocation1 [shape = 'u32[144,128]{1,0:T(1,128)}', space=vmem, size = 0x12000, scoped, tag = 'internal scratch']
  %s0 = inlined_call_operand.hbm [shape: f32[16,256], index: 0, kind: input, shape index: {}]
  %s1 = inlined_call_operand.hbm [shape: f32[256,128], index: 1, kind: input, shape index: {}]
  %s2 = inlined_call_operand.vmem [shape: f32[1,128], index: 2, kind: input, shape index: {}]
  %s3 = inlined_call_operand.hbm [shape: f32[128,512], index: 3, kind: input, shape index: {}]
  %s4 = inlined_call_operand.vmem [shape: f32[1,512], index: 4, kind: input, shape index: {}]
  %s5 = inlined_call_operand.hbm [shape: f32[16,512], index: 5, kind: output, shape index: {}]
  %s6 = sld [smem:[#allocation0]]
  $region42: #{tpu_custom_call.1} parent=0
    _
  %s8 = ssub.s32 1, %s6
  %s9 = scalar_select 0, %s8, %s6
  $region1: #{tpu_custom_call.1} parent=0
    #allocation2 [shape = 'u8[16384]{0}', space=vmem, size = 0x4000, scoped, tag = 'input window, operand 0, single buffered']
    #allocation3 [shape = 's32[1]{0}', space=sflag, size = 0x4, scoped, tag = 'scoped memory for tpu_custom_call.1']
    #allocation4 [shape = 's32[1]{0}', space=sflag, size = 0x4, scoped, tag = 'scoped memory for tpu_custom_call.1']
    #allocation5 [shape = 'u8[131072]{0}', space=vmem, size = 0x20000, scoped, tag = 'input window, operand 1, single buffered']
    #allocation6 [shape = 's32[1]{0}', space=sflag, size = 0x4, scoped, tag = 'scoped memory for tpu_custom_call.1']
    #allocation7 [shape = 'u8[262144]{0}', space=vmem, size = 0x40000, scoped, tag = 'input window, operand 3, single buffered']
    #allocation8 [shape = 'u8[32768]{0}', space=vmem, size = 0x8000, scoped, tag = 'output window, operand 0, single buffered']
    %10 = vsyncpa [#allocation3], 0
    %11 = vsyncpa [#allocation6], 0
    %12 = vsyncpa [#allocation4], 0
    // Predicated region
    $region2: #{tpu_custom_call.1} parent=1 // pred_check
      _
    $region3: #{tpu_custom_call.1} parent=1 // pred_check_branch
      %14 = sbr.rel (0) target = $region5
    $region4: #{tpu_custom_call.1} parent=1 // pred_region
      %s16 = ssub.s32 512, 512
      %17 = vsyncadd [#allocation3], %s16
      %s18 = sshll.u32 [#allocation2], 4
      %s19 = int_to_ptr.vmem [resolvable:$true] %s18
      %24 = dma.hbm_to_vmem [thread:$0]  %s0, 512, %s19, [#allocation3], 256, 256, 16
    $region5: #{tpu_custom_call.1} parent=1 // pred_fallthru
      _
    // Predicated region
    $region6: #{tpu_custom_call.1} parent=1 // pred_check
      _
    $region7: #{tpu_custom_call.1} parent=1 // pred_check_branch
      %26 = sbr.rel (0) target = $region9
    $region8: #{tpu_custom_call.1} parent=1 // pred_region
      %s28 = ssub.s32 4096, 4096
      %29 = vsyncadd [#allocation6], %s28
      %s30 = sshll.u32 [#allocation5], 4
      %s31 = int_to_ptr.vmem [resolvable:$true] %s30
      %36 = dma.hbm_to_vmem [thread:$0]  %s1, 4096, %s31, [#allocation6], 128, 128, 8
    $region9: #{tpu_custom_call.1} parent=1 // pred_fallthru
      _
    // Predicated region
    $region10: #{tpu_custom_call.1} parent=1 // pred_check
      _
    $region11: #{tpu_custom_call.1} parent=1 // pred_check_branch
      %38 = sbr.rel (0) target = $region13
    $region12: #{tpu_custom_call.1} parent=1 // pred_region
      _
    $region13: #{tpu_custom_call.1} parent=1 // pred_fallthru
      _
    // Predicated region
    $region14: #{tpu_custom_call.1} parent=1 // pred_check
      _
    $region15: #{tpu_custom_call.1} parent=1 // pred_check_branch
      %40 = sbr.rel (0) target = $region17
    $region16: #{tpu_custom_call.1} parent=1 // pred_region
      %s42 = ssub.s32 8192, 8192
      %43 = vsyncadd [#allocation6], %s42
      %s44 = sshll.u32 [#allocation7], 4
      %s45 = int_to_ptr.vmem [resolvable:$true] %s44
      %50 = dma.hbm_to_vmem [thread:$0]  %s3, 8192, %s45, [#allocation6], 512, 512, 32
    $region17: #{tpu_custom_call.1} parent=1 // pred_fallthru
      _
    // Predicated region
    $region18: #{tpu_custom_call.1} parent=1 // pred_check
      _
    $region19: #{tpu_custom_call.1} parent=1 // pred_check_branch
      %52 = sbr.rel (0) target = $region21
    $region20: #{tpu_custom_call.1} parent=1 // pred_region
      _
    $region21: #{tpu_custom_call.1} parent=1 // pred_fallthru
      _
    // Predicated region
    $region22: #{tpu_custom_call.1} parent=1 // pred_check
      _
    $region23: #{tpu_custom_call.1} parent=1 // pred_check_branch
      %54 = sbr.rel (0) target = $region25
    $region24: #{tpu_custom_call.1} parent=1 // pred_region
      %55 = dma.done [#allocation3], 512
    $region25: #{tpu_custom_call.1} parent=1 // pred_fallthru
      _
    // Predicated region
    $region26: #{tpu_custom_call.1} parent=1 // pred_check
      _
    $region27: #{tpu_custom_call.1} parent=1 // pred_check_branch
      %57 = sbr.rel (0) target = $region29
    $region28: #{tpu_custom_call.1} parent=1 // pred_region
      %58 = dma.done [#allocation6], 4096
    $region29: #{tpu_custom_call.1} parent=1 // pred_fallthru
      _
    // Predicated region
    $region30: #{tpu_custom_call.1} parent=1 // pred_check
      _
    $region31: #{tpu_custom_call.1} parent=1 // pred_check_branch
      %60 = sbr.rel (0) target = $region33
    $region32: #{tpu_custom_call.1} parent=1 // pred_region
      %61 = dma.done [#allocation6], 8192
    $region33: #{tpu_custom_call.1} parent=1 // pred_fallthru
      _
    %v62 = vld [vmem:[#allocation2] sm:$0xff]
    %v63 = vld [vmem:[#allocation2 + $0x8] sm:$0xff]
    %v64 = vld [vmem:[#allocation2 + $0x10] sm:$0xff]
    %v65 = vld [vmem:[#allocation2 + $0x18] sm:$0xff]
    %v66 = vld [vmem:[#allocation5] sm:$0xff]
    %v67 = vld [vmem:[#allocation5 + $0x8] sm:$0xff]
    %v68 = vld [vmem:[#allocation5 + $0x10] sm:$0xff]
    %v69 = vld [vmem:[#allocation5 + $0x18] sm:$0xff]
    %v70 = vld [vmem:[#allocation5 + $0x20] sm:$0xff]
    %v71 = vld [vmem:[#allocation5 + $0x28] sm:$0xff]
    %v72 = vld [vmem:[#allocation5 + $0x30] sm:$0xff]
    %v73 = vld [vmem:[#allocation5 + $0x38] sm:$0xff]
    %v74 = vld [vmem:[#allocation5 + $0x40] sm:$0xff]
    %v75 = vld [vmem:[#allocation5 + $0x48] sm:$0xff]
    %v76 = vld [vmem:[#allocation5 + $0x50] sm:$0xff]
    %v77 = vld [vmem:[#allocation5 + $0x58] sm:$0xff]
    %v78 = vld [vmem:[#allocation5 + $0x60] sm:$0xff]
    %v79 = vld [vmem:[#allocation5 + $0x68] sm:$0xff]
    %v80 = vld [vmem:[#allocation5 + $0x70] sm:$0xff]
    %v81 = vld [vmem:[#allocation5 + $0x78] sm:$0xff]
    %v82 = vld [vmem:[#allocation5 + $0x80] sm:$0xff]
    %v83 = vld [vmem:[#allocation5 + $0x88] sm:$0xff]
    %v84 = vld [vmem:[#allocation5 + $0x90] sm:$0xff]
    %v85 = vld [vmem:[#allocation5 + $0x98] sm:$0xff]
    %v86 = vld [vmem:[#allocation5 + $0xa0] sm:$0xff]
    %v87 = vld [vmem:[#allocation5 + $0xa8] sm:$0xff]
    %v88 = vld [vmem:[#allocation5 + $0xb0] sm:$0xff]
    %v89 = vld [vmem:[#allocation5 + $0xb8] sm:$0xff]
    %v90 = vld [vmem:[#allocation5 + $0xc0] sm:$0xff]
    %v91 = vld [vmem:[#allocation5 + $0xc8] sm:$0xff]
    %v92 = vld [vmem:[#allocation5 + $0xd0] sm:$0xff]
    %v93 = vld [vmem:[#allocation5 + $0xd8] sm:$0xff]
    %v94 = vld [vmem:[#allocation5 + $0xe0] sm:$0xff]
    %v95 = vld [vmem:[#allocation5 + $0xe8] sm:$0xff]
    %v96 = vld [vmem:[#allocation5 + $0xf0] sm:$0xff]
    %v97 = vld [vmem:[#allocation5 + $0xf8] sm:$0xff]
    %v98 = vld [vmem:[%s2] sm:$0x1]
    %v100 = vlaneseq
    %v101 = vshrl.u32 %v100, 7
    %v102 = vsub.s32 0, %v101
    %v103 = vrot.slane %v98, %v102
    %105 = vmatprep.subr.mxu0 0.0
    %106 = vmatpush1.msra.mxu0 %v66
    %107 = vmatprep.subr.mxu0 0.0
    %108 = vmatpush1.msra.mxu0 %v67
    %109 = vmatprep.subr.mxu0 0.0
    %110 = vmatpush1.msra.mxu0 %v68
    %111 = vmatprep.subr.mxu0 0.0
    %112 = vmatpush1.msra.mxu0 %v69
    %113 = vmatprep.subr.mxu0 0.0
    %114 = vmatpush1.msra.mxu0 %v70
    %115 = vmatprep.subr.mxu0 0.0
    %116 = vmatpush1.msra.mxu0 %v71
    %117 = vmatprep.subr.mxu0 0.0
    %118 = vmatpush1.msra.mxu0 %v72
    %119 = vmatprep.subr.mxu0 0.0
    %120 = vmatpush1.msra.mxu0 %v73
    %121 = vmatprep.subr.mxu0 0.0
    %122 = vmatpush1.msra.mxu0 %v74
    %123 = vmatprep.subr.mxu0 0.0
    %124 = vmatpush1.msra.mxu0 %v75
    %125 = vmatprep.subr.mxu0 0.0
    %126 = vmatpush1.msra.mxu0 %v76
    %127 = vmatprep.subr.mxu0 0.0
    %128 = vmatpush1.msra.mxu0 %v77
    %129 = vmatprep.subr.mxu0 0.0
    %130 = vmatpush1.msra.mxu0 %v78
    %131 = vmatprep.subr.mxu0 0.0
    %132 = vmatpush1.msra.mxu0 %v79
    %133 = vmatprep.subr.mxu0 0.0
    %134 = vmatpush1.msra.mxu0 %v80
    %135 = vmatprep.subr.mxu0 0.0
    %136 = vmatpush1.msra.mxu0 %v81
    %137 = vmatprep.subr.mxu0 0.0
    %138 = vmatpush1.msra.mxu0 %v82
    %139 = vmatprep.subr.mxu0 0.0
    %140 = vmatpush1.msra.mxu0 %v83
    %141 = vmatprep.subr.mxu0 0.0
    %142 = vmatpush1.msra.mxu0 %v84
    %143 = vmatprep.subr.mxu0 0.0
    %144 = vmatpush1.msra.mxu0 %v85
    %145 = vmatprep.subr.mxu0 0.0
    %146 = vmatpush1.msra.mxu0 %v86
    %147 = vmatprep.subr.mxu0 0.0
    %148 = vmatpush1.msra.mxu0 %v87
    %149 = vmatprep.subr.mxu0 0.0
    %150 = vmatpush1.msra.mxu0 %v88
    %151 = vmatprep.subr.mxu0 0.0
    %152 = vmatpush1.msra.mxu0 %v89
    %153 = vmatprep.subr.mxu0 0.0
    %154 = vmatpush1.msra.mxu0 %v90
    %155 = vmatprep.subr.mxu0 0.0
    %156 = vmatpush1.msra.mxu0 %v91
    %157 = vmatprep.subr.mxu0 0.0
    %158 = vmatpush1.msra.mxu0 %v92
    %159 = vmatprep.subr.mxu0 0.0
    %160 = vmatpush1.msra.mxu0 %v93
    %161 = vmatprep.subr.mxu0 0.0
    %162 = vmatpush1.msra.mxu0 %v94
    %163 = vmatprep.subr.mxu0 0.0
    %164 = vmatpush1.msra.mxu0 %v95
    %165 = vmatprep.subr.mxu0 0.0
    %166 = vmatpush1.msra.mxu0 %v96
    %167 = vmatprep.subr.mxu0 0.0
    %168 = vmatpush1.msra.mxu0 %v97
    %169 = vmatprep.mubr.f32.mxu0 %v63
    %170 = vmatmul.mubr.f32.gmra.mrb[0].mxu0 %v62
    %v171 = vpop.f32.mrb[0].mxu0
    %v172 = vadd.f32 %v103, %v171
    %v173 = vpop.f32.mrb[0].mxu0
    %174 = vmatprep.mubr.f32.mxu0 %v65
    %175 = vmatmul.mubr.f32.gmra.mrb[0].mxu0 %v64
    %v176 = vpop.f32.mrb[0].mxu0
    %v177 = vadd.f32 %v103, %v176
    %v178 = vpop.f32.mrb[0].mxu0
    %179 = vdwg.mxu0
    %v180 = vmax.f32 %v172, 0.0
    %v181 = vmax.f32 %v177, 0.0
    %v182 = vld [vmem:[#allocation7] sm:$0xff]
    %v183 = vld [vmem:[#allocation7 + $0x8] sm:$0xff]
    %v184 = vld [vmem:[#allocation7 + $0x10] sm:$0xff]
    %v185 = vld [vmem:[#allocation7 + $0x18] sm:$0xff]
    %v186 = vld [vmem:[#allocation7 + $0x20] sm:$0xff]
    %v187 = vld [vmem:[#allocation7 + $0x28] sm:$0xff]
    %v188 = vld [vmem:[#allocation7 + $0x30] sm:$0xff]
    %v189 = vld [vmem:[#allocation7 + $0x38] sm:$0xff]
    %v190 = vld [vmem:[#allocation7 + $0x40] sm:$0xff]
    %v191 = vld [vmem:[#allocation7 + $0x48] sm:$0xff]
    %v192 = vld [vmem:[#allocation7 + $0x50] sm:$0xff]
    %v193 = vld [vmem:[#allocation7 + $0x58] sm:$0xff]
    %v194 = vld [vmem:[#allocation7 + $0x60] sm:$0xff]
    %v195 = vld [vmem:[#allocation7 + $0x68] sm:$0xff]
    %v196 = vld [vmem:[#allocation7 + $0x70] sm:$0xff]
    %v197 = vld [vmem:[#allocation7 + $0x78] sm:$0xff]
    %v198 = vld [vmem:[#allocation7 + $0x80] sm:$0xff]
    %v199 = vld [vmem:[#allocation7 + $0x88] sm:$0xff]
    %v200 = vld [vmem:[#allocation7 + $0x90] sm:$0xff]
    %v201 = vld [vmem:[#allocation7 + $0x98] sm:$0xff]
    %v202 = vld [vmem:[#allocation7 + $0xa0] sm:$0xff]
    %v203 = vld [vmem:[#allocation7 + $0xa8] sm:$0xff]
    %v204 = vld [vmem:[#allocation7 + $0xb0] sm:$0xff]
    %v205 = vld [vmem:[#allocation7 + $0xb8] sm:$0xff]
    %v206 = vld [vmem:[#allocation7 + $0xc0] sm:$0xff]
    %v207 = vld [vmem:[#allocation7 + $0xc8] sm:$0xff]
    %v208 = vld [vmem:[#allocation7 + $0xd0] sm:$0xff]
    %v209 = vld [vmem:[#allocation7 + $0xd8] sm:$0xff]
    %v210 = vld [vmem:[#allocation7 + $0xe0] sm:$0xff]
    %v211 = vld [vmem:[#allocation7 + $0xe8] sm:$0xff]
    %v212 = vld [vmem:[#allocation7 + $0xf0] sm:$0xff]
    %v213 = vld [vmem:[#allocation7 + $0xf8] sm:$0xff]
    %v214 = vld [vmem:[#allocation7 + $0x100] sm:$0xff]
    %v215 = vld [vmem:[#allocation7 + $0x108] sm:$0xff]
    %v216 = vld [vmem:[#allocation7 + $0x110] sm:$0xff]
    %v217 = vld [vmem:[#allocation7 + $0x118] sm:$0xff]
    %v218 = vld [vmem:[#allocation7 + $0x120] sm:$0xff]
    %v219 = vld [vmem:[#allocation7 + $0x128] sm:$0xff]
    %v220 = vld [vmem:[#allocation7 + $0x130] sm:$0xff]
    %v221 = vld [vmem:[#allocation7 + $0x138] sm:$0xff]
    %v222 = vld [vmem:[#allocation7 + $0x140] sm:$0xff]
    %v223 = vld [vmem:[#allocation7 + $0x148] sm:$0xff]
    %v224 = vld [vmem:[#allocation7 + $0x150] sm:$0xff]
    %v225 = vld [vmem:[#allocation7 + $0x158] sm:$0xff]
    %v226 = vld [vmem:[#allocation7 + $0x160] sm:$0xff]
    %v227 = vld [vmem:[#allocation7 + $0x168] sm:$0xff]
    %v228 = vld [vmem:[#allocation7 + $0x170] sm:$0xff]
    %v229 = vld [vmem:[#allocation7 + $0x178] sm:$0xff]
    %v230 = vld [vmem:[#allocation7 + $0x180] sm:$0xff]
    %v231 = vld [vmem:[#allocation7 + $0x188] sm:$0xff]
    %v232 = vld [vmem:[#allocation7 + $0x190] sm:$0xff]
    %v233 = vld [vmem:[#allocation7 + $0x198] sm:$0xff]
    %v234 = vld [vmem:[#allocation7 + $0x1a0] sm:$0xff]
    %v235 = vld [vmem:[#allocation7 + $0x1a8] sm:$0xff]
    %v236 = vld [vmem:[#allocation7 + $0x1b0] sm:$0xff]
    %v237 = vld [vmem:[#allocation7 + $0x1b8] sm:$0xff]
    %v238 = vld [vmem:[#allocation7 + $0x1c0] sm:$0xff]
    %v239 = vld [vmem:[#allocation7 + $0x1c8] sm:$0xff]
    %v240 = vld [vmem:[#allocation7 + $0x1d0] sm:$0xff]
    %v241 = vld [vmem:[#allocation7 + $0x1d8] sm:$0xff]
    %v242 = vld [vmem:[#allocation7 + $0x1e0] sm:$0xff]
    %v243 = vld [vmem:[#allocation7 + $0x1e8] sm:$0xff]
    %v244 = vld [vmem:[#allocation7 + $0x1f0] sm:$0xff]
    %v245 = vld [vmem:[#allocation7 + $0x1f8] sm:$0xff]
    %v246 = vld [vmem:[%s4] sm:$0xf]
    %v248 = vlaneseq
    %v249 = vshrl.u32 %v248, 7
    %v250 = vsub.s32 0, %v249
    %v251 = vrot.slane %v246, %v250
    %v252 = vlaneseq
    %v253 = vshrl.u32 %v252, 7
    %v254 = vsub.s32 1, %v253
    %v255 = vrot.slane %v246, %v254
    %v256 = vlaneseq
    %v257 = vshrl.u32 %v256, 7
    %v258 = vsub.s32 2, %v257
    %v259 = vrot.slane %v246, %v258
    %v260 = vlaneseq
    %v261 = vshrl.u32 %v260, 7
    %v262 = vsub.s32 3, %v261
    %v263 = vrot.slane %v246, %v262
    %268 = vmatprep.subr.mxu0 %v183
    %269 = vmatpush1.msra.mxu0 %v182
    %270 = vmatprep.subr.mxu0 %v187
    %271 = vmatpush1.msra.mxu0 %v186
    %272 = vmatprep.subr.mxu0 %v191
    %273 = vmatpush1.msra.mxu0 %v190
    %274 = vmatprep.subr.mxu0 %v195
    %275 = vmatpush1.msra.mxu0 %v194
    %276 = vmatprep.subr.mxu0 %v199
    %277 = vmatpush1.msra.mxu0 %v198
    %278 = vmatprep.subr.mxu0 %v203
    %279 = vmatpush1.msra.mxu0 %v202
    %280 = vmatprep.subr.mxu0 %v207
    %281 = vmatpush1.msra.mxu0 %v206
    %282 = vmatprep.subr.mxu0 %v211
    %283 = vmatpush1.msra.mxu0 %v210
    %284 = vmatprep.subr.mxu0 %v215
    %285 = vmatpush1.msra.mxu0 %v214
    %286 = vmatprep.subr.mxu0 %v219
    %287 = vmatpush1.msra.mxu0 %v218
    %288 = vmatprep.subr.mxu0 %v223
    %289 = vmatpush1.msra.mxu0 %v222
    %290 = vmatprep.subr.mxu0 %v227
    %291 = vmatpush1.msra.mxu0 %v226
    %292 = vmatprep.subr.mxu0 %v231
    %293 = vmatpush1.msra.mxu0 %v230
    %294 = vmatprep.subr.mxu0 %v235
    %295 = vmatpush1.msra.mxu0 %v234
    %296 = vmatprep.subr.mxu0 %v239
    %297 = vmatpush1.msra.mxu0 %v238
    %298 = vmatprep.subr.mxu0 %v243
    %299 = vmatpush1.msra.mxu0 %v242
    %300 = vmatprep.subr.mxu0 0.0
    %301 = vmatpush1.msra.mxu0 0.0
    %302 = vmatprep.subr.mxu0 0.0
    %303 = vmatpush1.msra.mxu0 0.0
    %304 = vmatprep.subr.mxu0 0.0
    %305 = vmatpush1.msra.mxu0 0.0
    %306 = vmatprep.subr.mxu0 0.0
    %307 = vmatpush1.msra.mxu0 0.0
    %308 = vmatprep.subr.mxu0 0.0
    %309 = vmatpush1.msra.mxu0 0.0
    %310 = vmatprep.subr.mxu0 0.0
    %311 = vmatpush1.msra.mxu0 0.0
    %312 = vmatprep.subr.mxu0 0.0
    %313 = vmatpush1.msra.mxu0 0.0
    %314 = vmatprep.subr.mxu0 0.0
    %315 = vmatpush1.msra.mxu0 0.0
    %316 = vmatprep.subr.mxu0 0.0
    %317 = vmatpush1.msra.mxu0 0.0
    %318 = vmatprep.subr.mxu0 0.0
    %319 = vmatpush1.msra.mxu0 0.0
    %320 = vmatprep.subr.mxu0 0.0
    %321 = vmatpush1.msra.mxu0 0.0
    %322 = vmatprep.subr.mxu0 0.0
    %323 = vmatpush1.msra.mxu0 0.0
    %324 = vmatprep.subr.mxu0 0.0
    %325 = vmatpush1.msra.mxu0 0.0
    %326 = vmatprep.subr.mxu0 0.0
    %327 = vmatpush1.msra.mxu0 0.0
    %328 = vmatprep.subr.mxu0 0.0
    %329 = vmatpush1.msra.mxu0 0.0
    %330 = vmatprep.subr.mxu0 0.0
    %331 = vmatpush1.msra.mxu0 0.0
    %332 = vmatprep.mubr.f32.mxu0 0.0
    %333 = vmatmul.mubr.f32.gmra.mrb[0].mxu0 %v180
    %v334 = vpop.f32.mrb[0].mxu0
    %v335 = vadd.f32 %v251, %v334
    %v336 = vpop.f32.mrb[0].mxu0
    %v337 = vadd.f32 %v255, %v336
    %338 = vmatprep.mubr.f32.mxu0 0.0
    %339 = vmatmul.mubr.f32.gmra.mrb[0].mxu0 %v181
    %v340 = vpop.f32.mrb[0].mxu0
    %v341 = vadd.f32 %v251, %v340
    %v342 = vpop.f32.mrb[0].mxu0
    %v343 = vadd.f32 %v255, %v342
    %344 = vdwg.mxu0
    %345 = vmatprep.subr.mxu0 %v185
    %346 = vmatpush1.msra.mxu0 %v184
    %347 = vmatprep.subr.mxu0 %v189
    %348 = vmatpush1.msra.mxu0 %v188
    %349 = vmatprep.subr.mxu0 %v193
    %350 = vmatpush1.msra.mxu0 %v192
    %351 = vmatprep.subr.mxu0 %v197
    %352 = vmatpush1.msra.mxu0 %v196
    %353 = vmatprep.subr.mxu0 %v201
    %354 = vmatpush1.msra.mxu0 %v200
    %355 = vmatprep.subr.mxu0 %v205
    %356 = vmatpush1.msra.mxu0 %v204
    %357 = vmatprep.subr.mxu0 %v209
    %358 = vmatpush1.msra.mxu0 %v208
    %359 = vmatprep.subr.mxu0 %v213
    %360 = vmatpush1.msra.mxu0 %v212
    %361 = vmatprep.subr.mxu0 %v217
    %362 = vmatpush1.msra.mxu0 %v216
    %363 = vmatprep.subr.mxu0 %v221
    %364 = vmatpush1.msra.mxu0 %v220
    %365 = vmatprep.subr.mxu0 %v225
    %366 = vmatpush1.msra.mxu0 %v224
    %367 = vmatprep.subr.mxu0 %v229
    %368 = vmatpush1.msra.mxu0 %v228
    %369 = vmatprep.subr.mxu0 %v233
    %370 = vmatpush1.msra.mxu0 %v232
    %371 = vmatprep.subr.mxu0 %v237
    %372 = vmatpush1.msra.mxu0 %v236
    %373 = vmatprep.subr.mxu0 %v241
    %374 = vmatpush1.msra.mxu0 %v240
    %375 = vmatprep.subr.mxu0 %v245
    %376 = vmatpush1.msra.mxu0 %v244
    %377 = vmatprep.subr.mxu0 0.0
    %378 = vmatpush1.msra.mxu0 0.0
    %379 = vmatprep.subr.mxu0 0.0
    %380 = vmatpush1.msra.mxu0 0.0
    %381 = vmatprep.subr.mxu0 0.0
    %382 = vmatpush1.msra.mxu0 0.0
    %383 = vmatprep.subr.mxu0 0.0
    %384 = vmatpush1.msra.mxu0 0.0
    %385 = vmatprep.subr.mxu0 0.0
    %386 = vmatpush1.msra.mxu0 0.0
    %387 = vmatprep.subr.mxu0 0.0
    %388 = vmatpush1.msra.mxu0 0.0
    %389 = vmatprep.subr.mxu0 0.0
    %390 = vmatpush1.msra.mxu0 0.0
    %391 = vmatprep.subr.mxu0 0.0
    %392 = vmatpush1.msra.mxu0 0.0
    %393 = vmatprep.subr.mxu0 0.0
    %394 = vmatpush1.msra.mxu0 0.0
    %395 = vmatprep.subr.mxu0 0.0
    %396 = vmatpush1.msra.mxu0 0.0
    %397 = vmatprep.subr.mxu0 0.0
    %398 = vmatpush1.msra.mxu0 0.0
    %399 = vmatprep.subr.mxu0 0.0
    %400 = vmatpush1.msra.mxu0 0.0
    %401 = vmatprep.subr.mxu0 0.0
    %402 = vmatpush1.msra.mxu0 0.0
    %403 = vmatprep.subr.mxu0 0.0
    %404 = vmatpush1.msra.mxu0 0.0
    %405 = vmatprep.subr.mxu0 0.0
    %406 = vmatpush1.msra.mxu0 0.0
    %407 = vmatprep.subr.mxu0 0.0
    %408 = vmatpush1.msra.mxu0 0.0
    %409 = vmatprep.mubr.f32.mxu0 0.0
    %410 = vmatmul.mubr.f32.gmra.mrb[0].mxu0 %v180
    %v411 = vpop.f32.mrb[0].mxu0
    %v412 = vadd.f32 %v259, %v411
    %v413 = vpop.f32.mrb[0].mxu0
    %v414 = vadd.f32 %v263, %v413
    %415 = vmatprep.mubr.f32.mxu0 0.0
    %416 = vmatmul.mubr.f32.gmra.mrb[0].mxu0 %v181
    %v417 = vpop.f32.mrb[0].mxu0
    %v418 = vadd.f32 %v259, %v417
    %v419 = vpop.f32.mrb[0].mxu0
    %v420 = vadd.f32 %v263, %v419
    %421 = vdwg.mxu0
    %422 = vst [vmem:[#allocation8] sm:$0xff] %v335
    %423 = vst [vmem:[#allocation8 + $0x8] sm:$0xff] %v337
    %424 = vst [vmem:[#allocation8 + $0x10] sm:$0xff] %v412
    %425 = vst [vmem:[#allocation8 + $0x18] sm:$0xff] %v414
    %426 = vst [vmem:[#allocation8 + $0x20] sm:$0xff] %v341
    %427 = vst [vmem:[#allocation8 + $0x28] sm:$0xff] %v343
    %428 = vst [vmem:[#allocation8 + $0x30] sm:$0xff] %v418
    %429 = vst [vmem:[#allocation8 + $0x38] sm:$0xff] %v420
    // Predicated region
    $region34: #{tpu_custom_call.1} parent=1 // pred_check
      _
    $region35: #{tpu_custom_call.1} parent=1 // pred_check_branch
      %431 = sbr.rel (0) target = $region37
    $region36: #{tpu_custom_call.1} parent=1 // pred_region
      %s433 = ssub.s32 1024, 1024
      %434 = vsyncadd [#allocation4], %s433
      %s435 = sshll.u32 [#allocation8], 4
      %s436 = int_to_ptr.vmem [resolvable:$true] %s435
      %441 = dma.vmem_to_hbm [thread:$0]  %s436, 1024, %s5, [#allocation4], 512, 512, 32
    $region37: #{tpu_custom_call.1} parent=1 // pred_fallthru
      _
    // Predicated region
    $region38: #{tpu_custom_call.1} parent=1 // pred_check
      _
    $region39: #{tpu_custom_call.1} parent=1 // pred_check_branch
      %443 = sbr.rel (0) target = $region41
    $region40: #{tpu_custom_call.1} parent=1 // pred_region
      %444 = dma.done [#allocation4], 1024
    $region41: #{tpu_custom_call.1} parent=1 // pred_fallthru
      _
    %445 = vsyncpa [#allocation3], 1
    %446 = vsyncpa [#allocation6], 1
    %447 = vsyncpa [#allocation4], 1

// kernel: tpu_custom_call.1
$region0: #{tpu_custom_call.1}
  #allocation0 [shape = 'u32[]', space=smem, size = 0x4, offset = 0x4, fixed_abs, tag = 'smem constant byte address 0x4 - core index']
  #allocation1 [shape = 'u32[144,128]{1,0:T(1,128)}', space=vmem, size = 0x12000, scoped, tag = 'internal scratch']
  %s0 = inlined_call_operand.hbm [shape: f32[16,256], index: 0, kind: input, shape index: {}]
  %s1 = inlined_call_operand.hbm [shape: f32[256,128], index: 1, kind: input, shape index: {}]
  %s2 = inlined_call_operand.vmem [shape: f32[1,128], index: 2, kind: input, shape index: {}]
  %s3 = inlined_call_operand.hbm [shape: f32[128,512], index: 3, kind: input, shape index: {}]
  %s4 = inlined_call_operand.vmem [shape: f32[1,512], index: 4, kind: input, shape index: {}]
  %s5 = inlined_call_operand.hbm [shape: f32[16,512], index: 5, kind: output, shape index: {}]
  %s6 = sld [smem:[#allocation0]]
  $region42: #{tpu_custom_call.1} parent=0
    _
  %s8 = ssub.s32 1, %s6
  %s9 = scalar_select 0, %s8, %s6
  $region1: #{tpu_custom_call.1} parent=0
    #allocation2 [shape = 'u8[16384]{0}', space=vmem, size = 0x4000, scoped, tag = 'input window, operand 0, single buffered']
    #allocation3 [shape = 's32[1]{0}', space=sflag, size = 0x4, scoped, tag = 'scoped memory for tpu_custom_call.1']
    #allocation4 [shape = 's32[1]{0}', space=sflag, size = 0x4, scoped, tag = 'scoped memory for tpu_custom_call.1']
    #allocation5 [shape = 'u8[131072]{0}', space=vmem, size = 0x20000, scoped, tag = 'input window, operand 1, single buffered']
    #allocation6 [shape = 's32[1]{0}', space=sflag, size = 0x4, scoped, tag = 'scoped memory for tpu_custom_call.1']
    #allocation7 [shape = 'u8[262144]{0}', space=vmem, size = 0x40000, scoped, tag = 'input window, operand 3, single buffered']
    #allocation8 [shape = 'u8[32768]{0}', space=vmem, size = 0x8000, scoped, tag = 'output window, operand 0, single buffered']
    %10 = vsyncpa [#allocation3], 0
    %11 = vsyncpa [#allocation6], 0
    %12 = vsyncpa [#allocation4], 0
    // Predicated region
    $region2: #{tpu_custom_call.1} parent=1 // pred_check
      _
    $region3: #{tpu_custom_call.1} parent=1 // pred_check_branch
      %14 = sbr.rel (0) target = $region5
    $region4: #{tpu_custom_call.1} parent=1 // pred_region
      %s16 = ssub.s32 512, 512
      %17 = vsyncadd [#allocation3], %s16
      %s18 = sshll.u32 [#allocation2], 4
      %s19 = int_to_ptr.vmem [resolvable:$true] %s18
      %24 = dma.hbm_to_vmem [thread:$0]  %s0, 512, %s19, [#allocation3], 256, 256, 16
    $region5: #{tpu_custom_call.1} parent=1 // pred_fallthru
      _
    // Predicated region
    $region6: #{tpu_custom_call.1} parent=1 // pred_check
      _
    $region7: #{tpu_custom_call.1} parent=1 // pred_check_branch
      %26 = sbr.rel (0) target = $region9
    $region8: #{tpu_custom_call.1} parent=1 // pred_region
      %s28 = ssub.s32 4096, 4096
      %29 = vsyncadd [#allocation6], %s28
      %s30 = sshll.u32 [#allocation5], 4
      %s31 = int_to_ptr.vmem [resolvable:$true] %s30
      %36 = dma.hbm_to_vmem [thread:$0]  %s1, 4096, %s31, [#allocation6], 128, 128, 8
    $region9: #{tpu_custom_call.1} parent=1 // pred_fallthru
      _
    // Predicated region
    $region10: #{tpu_custom_call.1} parent=1 // pred_check
      _
    $region11: #{tpu_custom_call.1} parent=1 // pred_check_branch
      %38 = sbr.rel (0) target = $region13
    $region12: #{tpu_custom_call.1} parent=1 // pred_region
      _
    $region13: #{tpu_custom_call.1} parent=1 // pred_fallthru
      _
    // Predicated region
    $region14: #{tpu_custom_call.1} parent=1 // pred_check
      _
    $region15: #{tpu_custom_call.1} parent=1 // pred_check_branch
      %40 = sbr.rel (0) target = $region17
    $region16: #{tpu_custom_call.1} parent=1 // pred_region
      %s42 = ssub.s32 8192, 8192
      %43 = vsyncadd [#allocation6], %s42
      %s44 = sshll.u32 [#allocation7], 4
      %s45 = int_to_ptr.vmem [resolvable:$true] %s44
      %50 = dma.hbm_to_vmem [thread:$0]  %s3, 8192, %s45, [#allocation6], 512, 512, 32
    $region17: #{tpu_custom_call.1} parent=1 // pred_fallthru
      _
    // Predicated region
    $region18: #{tpu_custom_call.1} parent=1 // pred_check
      _
    $region19: #{tpu_custom_call.1} parent=1 // pred_check_branch
      %52 = sbr.rel (0) target = $region21
    $region20: #{tpu_custom_call.1} parent=1 // pred_region
      _
    $region21: #{tpu_custom_call.1} parent=1 // pred_fallthru
      _
    // Predicated region
    $region22: #{tpu_custom_call.1} parent=1 // pred_check
      _
    $region23: #{tpu_custom_call.1} parent=1 // pred_check_branch
      %54 = sbr.rel (0) target = $region25
    $region24: #{tpu_custom_call.1} parent=1 // pred_region
      %55 = dma.done [#allocation3], 512
    $region25: #{tpu_custom_call.1} parent=1 // pred_fallthru
      _
    // Predicated region
    $region26: #{tpu_custom_call.1} parent=1 // pred_check
      _
    $region27: #{tpu_custom_call.1} parent=1 // pred_check_branch
      %57 = sbr.rel (0) target = $region29
    $region28: #{tpu_custom_call.1} parent=1 // pred_region
      %58 = dma.done [#allocation6], 4096
    $region29: #{tpu_custom_call.1} parent=1 // pred_fallthru
      _
    // Predicated region
    $region30: #{tpu_custom_call.1} parent=1 // pred_check
      _
    $region31: #{tpu_custom_call.1} parent=1 // pred_check_branch
      %60 = sbr.rel (0) target = $region33
    $region32: #{tpu_custom_call.1} parent=1 // pred_region
      %61 = dma.done [#allocation6], 8192
    $region33: #{tpu_custom_call.1} parent=1 // pred_fallthru
      _
    %v62 = vld [vmem:[#allocation2] sm:$0xff]
    %v63 = vld [vmem:[#allocation2 + $0x8] sm:$0xff]
    %v64 = vld [vmem:[#allocation2 + $0x10] sm:$0xff]
    %v65 = vld [vmem:[#allocation2 + $0x18] sm:$0xff]
    %v66 = vld [vmem:[#allocation5] sm:$0xff]
    %v67 = vld [vmem:[#allocation5 + $0x8] sm:$0xff]
    %v68 = vld [vmem:[#allocation5 + $0x10] sm:$0xff]
    %v69 = vld [vmem:[#allocation5 + $0x18] sm:$0xff]
    %v70 = vld [vmem:[#allocation5 + $0x20] sm:$0xff]
    %v71 = vld [vmem:[#allocation5 + $0x28] sm:$0xff]
    %v72 = vld [vmem:[#allocation5 + $0x30] sm:$0xff]
    %v73 = vld [vmem:[#allocation5 + $0x38] sm:$0xff]
    %v74 = vld [vmem:[#allocation5 + $0x40] sm:$0xff]
    %v75 = vld [vmem:[#allocation5 + $0x48] sm:$0xff]
    %v76 = vld [vmem:[#allocation5 + $0x50] sm:$0xff]
    %v77 = vld [vmem:[#allocation5 + $0x58] sm:$0xff]
    %v78 = vld [vmem:[#allocation5 + $0x60] sm:$0xff]
    %v79 = vld [vmem:[#allocation5 + $0x68] sm:$0xff]
    %v80 = vld [vmem:[#allocation5 + $0x70] sm:$0xff]
    %v81 = vld [vmem:[#allocation5 + $0x78] sm:$0xff]
    %v82 = vld [vmem:[#allocation5 + $0x80] sm:$0xff]
    %v83 = vld [vmem:[#allocation5 + $0x88] sm:$0xff]
    %v84 = vld [vmem:[#allocation5 + $0x90] sm:$0xff]
    %v85 = vld [vmem:[#allocation5 + $0x98] sm:$0xff]
    %v86 = vld [vmem:[#allocation5 + $0xa0] sm:$0xff]
    %v87 = vld [vmem:[#allocation5 + $0xa8] sm:$0xff]
    %v88 = vld [vmem:[#allocation5 + $0xb0] sm:$0xff]
    %v89 = vld [vmem:[#allocation5 + $0xb8] sm:$0xff]
    %v90 = vld [vmem:[#allocation5 + $0xc0] sm:$0xff]
    %v91 = vld [vmem:[#allocation5 + $0xc8] sm:$0xff]
    %v92 = vld [vmem:[#allocation5 + $0xd0] sm:$0xff]
    %v93 = vld [vmem:[#allocation5 + $0xd8] sm:$0xff]
    %v94 = vld [vmem:[#allocation5 + $0xe0] sm:$0xff]
    %v95 = vld [vmem:[#allocation5 + $0xe8] sm:$0xff]
    %v96 = vld [vmem:[#allocation5 + $0xf0] sm:$0xff]
    %v97 = vld [vmem:[#allocation5 + $0xf8] sm:$0xff]
    %v98 = vld [vmem:[%s2] sm:$0x1]
    %v100 = vlaneseq
    %v101 = vshrl.u32 %v100, 7
    %v102 = vsub.s32 0, %v101
    %v103 = vrot.slane %v98, %v102
    %105 = vmatprep.subr.mxu0 0.0
    %106 = vmatpush1.msra.mxu0 %v66
    %107 = vmatprep.subr.mxu0 0.0
    %108 = vmatpush1.msra.mxu0 %v67
    %109 = vmatprep.subr.mxu0 0.0
    %110 = vmatpush1.msra.mxu0 %v68
    %111 = vmatprep.subr.mxu0 0.0
    %112 = vmatpush1.msra.mxu0 %v69
    %113 = vmatprep.subr.mxu0 0.0
    %114 = vmatpush1.msra.mxu0 %v70
    %115 = vmatprep.subr.mxu0 0.0
    %116 = vmatpush1.msra.mxu0 %v71
    %117 = vmatprep.subr.mxu0 0.0
    %118 = vmatpush1.msra.mxu0 %v72
    %119 = vmatprep.subr.mxu0 0.0
    %120 = vmatpush1.msra.mxu0 %v73
    %121 = vmatprep.subr.mxu0 0.0
    %122 = vmatpush1.msra.mxu0 %v74
    %123 = vmatprep.subr.mxu0 0.0
    %124 = vmatpush1.msra.mxu0 %v75
    %125 = vmatprep.subr.mxu0 0.0
    %126 = vmatpush1.msra.mxu0 %v76
    %127 = vmatprep.subr.mxu0 0.0
    %128 = vmatpush1.msra.mxu0 %v77
    %129 = vmatprep.subr.mxu0 0.0
    %130 = vmatpush1.msra.mxu0 %v78
    %131 = vmatprep.subr.mxu0 0.0
    %132 = vmatpush1.msra.mxu0 %v79
    %133 = vmatprep.subr.mxu0 0.0
    %134 = vmatpush1.msra.mxu0 %v80
    %135 = vmatprep.subr.mxu0 0.0
    %136 = vmatpush1.msra.mxu0 %v81
    %137 = vmatprep.subr.mxu0 0.0
    %138 = vmatpush1.msra.mxu0 %v82
    %139 = vmatprep.subr.mxu0 0.0
    %140 = vmatpush1.msra.mxu0 %v83
    %141 = vmatprep.subr.mxu0 0.0
    %142 = vmatpush1.msra.mxu0 %v84
    %143 = vmatprep.subr.mxu0 0.0
    %144 = vmatpush1.msra.mxu0 %v85
    %145 = vmatprep.subr.mxu0 0.0
    %146 = vmatpush1.msra.mxu0 %v86
    %147 = vmatprep.subr.mxu0 0.0
    %148 = vmatpush1.msra.mxu0 %v87
    %149 = vmatprep.subr.mxu0 0.0
    %150 = vmatpush1.msra.mxu0 %v88
    %151 = vmatprep.subr.mxu0 0.0
    %152 = vmatpush1.msra.mxu0 %v89
    %153 = vmatprep.subr.mxu0 0.0
    %154 = vmatpush1.msra.mxu0 %v90
    %155 = vmatprep.subr.mxu0 0.0
    %156 = vmatpush1.msra.mxu0 %v91
    %157 = vmatprep.subr.mxu0 0.0
    %158 = vmatpush1.msra.mxu0 %v92
    %159 = vmatprep.subr.mxu0 0.0
    %160 = vmatpush1.msra.mxu0 %v93
    %161 = vmatprep.subr.mxu0 0.0
    %162 = vmatpush1.msra.mxu0 %v94
    %163 = vmatprep.subr.mxu0 0.0
    %164 = vmatpush1.msra.mxu0 %v95
    %165 = vmatprep.subr.mxu0 0.0
    %166 = vmatpush1.msra.mxu0 %v96
    %167 = vmatprep.subr.mxu0 0.0
    %168 = vmatpush1.msra.mxu0 %v97
    %169 = vmatprep.mubr.f32.mxu0 %v63
    %170 = vmatmul.mubr.f32.gmra.mrb[0].mxu0 %v62
    %v171 = vpop.f32.mrb[0].mxu0
    %v172 = vadd.f32 %v103, %v171
    %v173 = vpop.f32.mrb[0].mxu0
    %174 = vmatprep.mubr.f32.mxu0 %v65
    %175 = vmatmul.mubr.f32.gmra.mrb[0].mxu0 %v64
    %v176 = vpop.f32.mrb[0].mxu0
    %v177 = vadd.f32 %v103, %v176
    %v178 = vpop.f32.mrb[0].mxu0
    %179 = vdwg.mxu0
    %v180 = vmax.f32 %v172, 0.0
    %v181 = vmax.f32 %v177, 0.0
    %v182 = vld [vmem:[#allocation7] sm:$0xff]
    %v183 = vld [vmem:[#allocation7 + $0x8] sm:$0xff]
    %v184 = vld [vmem:[#allocation7 + $0x10] sm:$0xff]
    %v185 = vld [vmem:[#allocation7 + $0x18] sm:$0xff]
    %v186 = vld [vmem:[#allocation7 + $0x20] sm:$0xff]
    %v187 = vld [vmem:[#allocation7 + $0x28] sm:$0xff]
    %v188 = vld [vmem:[#allocation7 + $0x30] sm:$0xff]
    %v189 = vld [vmem:[#allocation7 + $0x38] sm:$0xff]
    %v190 = vld [vmem:[#allocation7 + $0x40] sm:$0xff]
    %v191 = vld [vmem:[#allocation7 + $0x48] sm:$0xff]
    %v192 = vld [vmem:[#allocation7 + $0x50] sm:$0xff]
    %v193 = vld [vmem:[#allocation7 + $0x58] sm:$0xff]
    %v194 = vld [vmem:[#allocation7 + $0x60] sm:$0xff]
    %v195 = vld [vmem:[#allocation7 + $0x68] sm:$0xff]
    %v196 = vld [vmem:[#allocation7 + $0x70] sm:$0xff]
    %v197 = vld [vmem:[#allocation7 + $0x78] sm:$0xff]
    %v198 = vld [vmem:[#allocation7 + $0x80] sm:$0xff]
    %v199 = vld [vmem:[#allocation7 + $0x88] sm:$0xff]
    %v200 = vld [vmem:[#allocation7 + $0x90] sm:$0xff]
    %v201 = vld [vmem:[#allocation7 + $0x98] sm:$0xff]
    %v202 = vld [vmem:[#allocation7 + $0xa0] sm:$0xff]
    %v203 = vld [vmem:[#allocation7 + $0xa8] sm:$0xff]
    %v204 = vld [vmem:[#allocation7 + $0xb0] sm:$0xff]
    %v205 = vld [vmem:[#allocation7 + $0xb8] sm:$0xff]
    %v206 = vld [vmem:[#allocation7 + $0xc0] sm:$0xff]
    %v207 = vld [vmem:[#allocation7 + $0xc8] sm:$0xff]
    %v208 = vld [vmem:[#allocation7 + $0xd0] sm:$0xff]
    %v209 = vld [vmem:[#allocation7 + $0xd8] sm:$0xff]
    %v210 = vld [vmem:[#allocation7 + $0xe0] sm:$0xff]
    %v211 = vld [vmem:[#allocation7 + $0xe8] sm:$0xff]
    %v212 = vld [vmem:[#allocation7 + $0xf0] sm:$0xff]
    %v213 = vld [vmem:[#allocation7 + $0xf8] sm:$0xff]
    %v214 = vld [vmem:[#allocation7 + $0x100] sm:$0xff]
    %v215 = vld [vmem:[#allocation7 + $0x108] sm:$0xff]
    %v216 = vld [vmem:[#allocation7 + $0x110] sm:$0xff]
    %v217 = vld [vmem:[#allocation7 + $0x118] sm:$0xff]
    %v218 = vld [vmem:[#allocation7 + $0x120] sm:$0xff]
    %v219 = vld [vmem:[#allocation7 + $0x128] sm:$0xff]
    %v220 = vld [vmem:[#allocation7 + $0x130] sm:$0xff]
    %v221 = vld [vmem:[#allocation7 + $0x138] sm:$0xff]
    %v222 = vld [vmem:[#allocation7 + $0x140] sm:$0xff]
    %v223 = vld [vmem:[#allocation7 + $0x148] sm:$0xff]
    %v224 = vld [vmem:[#allocation7 + $0x150] sm:$0xff]
    %v225 = vld [vmem:[#allocation7 + $0x158] sm:$0xff]
    %v226 = vld [vmem:[#allocation7 + $0x160] sm:$0xff]
    %v227 = vld [vmem:[#allocation7 + $0x168] sm:$0xff]
    %v228 = vld [vmem:[#allocation7 + $0x170] sm:$0xff]
    %v229 = vld [vmem:[#allocation7 + $0x178] sm:$0xff]
    %v230 = vld [vmem:[#allocation7 + $0x180] sm:$0xff]
    %v231 = vld [vmem:[#allocation7 + $0x188] sm:$0xff]
    %v232 = vld [vmem:[#allocation7 + $0x190] sm:$0xff]
    %v233 = vld [vmem:[#allocation7 + $0x198] sm:$0xff]
    %v234 = vld [vmem:[#allocation7 + $0x1a0] sm:$0xff]
    %v235 = vld [vmem:[#allocation7 + $0x1a8] sm:$0xff]
    %v236 = vld [vmem:[#allocation7 + $0x1b0] sm:$0xff]
    %v237 = vld [vmem:[#allocation7 + $0x1b8] sm:$0xff]
    %v238 = vld [vmem:[#allocation7 + $0x1c0] sm:$0xff]
    %v239 = vld [vmem:[#allocation7 + $0x1c8] sm:$0xff]
    %v240 = vld [vmem:[#allocation7 + $0x1d0] sm:$0xff]
    %v241 = vld [vmem:[#allocation7 + $0x1d8] sm:$0xff]
    %v242 = vld [vmem:[#allocation7 + $0x1e0] sm:$0xff]
    %v243 = vld [vmem:[#allocation7 + $0x1e8] sm:$0xff]
    %v244 = vld [vmem:[#allocation7 + $0x1f0] sm:$0xff]
    %v245 = vld [vmem:[#allocation7 + $0x1f8] sm:$0xff]
    %v246 = vld [vmem:[%s4] sm:$0xf]
    %v248 = vlaneseq
    %v249 = vshrl.u32 %v248, 7
    %v250 = vsub.s32 0, %v249
    %v251 = vrot.slane %v246, %v250
    %v252 = vlaneseq
    %v253 = vshrl.u32 %v252, 7
    %v254 = vsub.s32 1, %v253
    %v255 = vrot.slane %v246, %v254
    %v256 = vlaneseq
    %v257 = vshrl.u32 %v256, 7
    %v258 = vsub.s32 2, %v257
    %v259 = vrot.slane %v246, %v258
    %v260 = vlaneseq
    %v261 = vshrl.u32 %v260, 7
    %v262 = vsub.s32 3, %v261
    %v263 = vrot.slane %v246, %v262
    %268 = vmatprep.subr.mxu0 %v183
    %269 = vmatpush1.msra.mxu0 %v182
    %270 = vmatprep.subr.mxu0 %v187
    %271 = vmatpush1.msra.mxu0 %v186
    %272 = vmatprep.subr.mxu0 %v191
    %273 = vmatpush1.msra.mxu0 %v190
    %274 = vmatprep.subr.mxu0 %v195
    %275 = vmatpush1.msra.mxu0 %v194
    %276 = vmatprep.subr.mxu0 %v199
    %277 = vmatpush1.msra.mxu0 %v198
    %278 = vmatprep.subr.mxu0 %v203
    %279 = vmatpush1.msra.mxu0 %v202
    %280 = vmatprep.subr.mxu0 %v207
    %281 = vmatpush1.msra.mxu0 %v206
    %282 = vmatprep.subr.mxu0 %v211
    %283 = vmatpush1.msra.mxu0 %v210
    %284 = vmatprep.subr.mxu0 %v215
    %285 = vmatpush1.msra.mxu0 %v214
    %286 = vmatprep.subr.mxu0 %v219
    %287 = vmatpush1.msra.mxu0 %v218
    %288 = vmatprep.subr.mxu0 %v223
    %289 = vmatpush1.msra.mxu0 %v222
    %290 = vmatprep.subr.mxu0 %v227
    %291 = vmatpush1.msra.mxu0 %v226
    %292 = vmatprep.subr.mxu0 %v231
    %293 = vmatpush1.msra.mxu0 %v230
    %294 = vmatprep.subr.mxu0 %v235
    %295 = vmatpush1.msra.mxu0 %v234
    %296 = vmatprep.subr.mxu0 %v239
    %297 = vmatpush1.msra.mxu0 %v238
    %298 = vmatprep.subr.mxu0 %v243
    %299 = vmatpush1.msra.mxu0 %v242
    %300 = vmatprep.subr.mxu0 0.0
    %301 = vmatpush1.msra.mxu0 0.0
    %302 = vmatprep.subr.mxu0 0.0
    %303 = vmatpush1.msra.mxu0 0.0
    %304 = vmatprep.subr.mxu0 0.0
    %305 = vmatpush1.msra.mxu0 0.0
    %306 = vmatprep.subr.mxu0 0.0
    %307 = vmatpush1.msra.mxu0 0.0
    %308 = vmatprep.subr.mxu0 0.0
    %309 = vmatpush1.msra.mxu0 0.0
    %310 = vmatprep.subr.mxu0 0.0
    %311 = vmatpush1.msra.mxu0 0.0
    %312 = vmatprep.subr.mxu0 0.0
    %313 = vmatpush1.msra.mxu0 0.0
    %314 = vmatprep.subr.mxu0 0.0
    %315 = vmatpush1.msra.mxu0 0.0
    %316 = vmatprep.subr.mxu0 0.0
    %317 = vmatpush1.msra.mxu0 0.0
    %318 = vmatprep.subr.mxu0 0.0
    %319 = vmatpush1.msra.mxu0 0.0
    %320 = vmatprep.subr.mxu0 0.0
    %321 = vmatpush1.msra.mxu0 0.0
    %322 = vmatprep.subr.mxu0 0.0
    %323 = vmatpush1.msra.mxu0 0.0
    %324 = vmatprep.subr.mxu0 0.0
    %325 = vmatpush1.msra.mxu0 0.0
    %326 = vmatprep.subr.mxu0 0.0
    %327 = vmatpush1.msra.mxu0 0.0
    %328 = vmatprep.subr.mxu0 0.0
    %329 = vmatpush1.msra.mxu0 0.0
    %330 = vmatprep.subr.mxu0 0.0
    %331 = vmatpush1.msra.mxu0 0.0
    %332 = vmatprep.mubr.f32.mxu0 0.0
    %333 = vmatmul.mubr.f32.gmra.mrb[0].mxu0 %v180
    %v334 = vpop.f32.mrb[0].mxu0
    %v335 = vadd.f32 %v251, %v334
    %v336 = vpop.f32.mrb[0].mxu0
    %v337 = vadd.f32 %v255, %v336
    %338 = vmatprep.mubr.f32.mxu0 0.0
    %339 = vmatmul.mubr.f32.gmra.mrb[0].mxu0 %v181
    %v340 = vpop.f32.mrb[0].mxu0
    %v341 = vadd.f32 %v251, %v340
    %v342 = vpop.f32.mrb[0].mxu0
    %v343 = vadd.f32 %v255, %v342
    %344 = vdwg.mxu0
    %345 = vmatprep.subr.mxu0 %v185
    %346 = vmatpush1.msra.mxu0 %v184
    %347 = vmatprep.subr.mxu0 %v189
    %348 = vmatpush1.msra.mxu0 %v188
    %349 = vmatprep.subr.mxu0 %v193
    %350 = vmatpush1.msra.mxu0 %v192
    %351 = vmatprep.subr.mxu0 %v197
    %352 = vmatpush1.msra.mxu0 %v196
    %353 = vmatprep.subr.mxu0 %v201
    %354 = vmatpush1.msra.mxu0 %v200
    %355 = vmatprep.subr.mxu0 %v205
    %356 = vmatpush1.msra.mxu0 %v204
    %357 = vmatprep.subr.mxu0 %v209
    %358 = vmatpush1.msra.mxu0 %v208
    %359 = vmatprep.subr.mxu0 %v213
    %360 = vmatpush1.msra.mxu0 %v212
    %361 = vmatprep.subr.mxu0 %v217
    %362 = vmatpush1.msra.mxu0 %v216
    %363 = vmatprep.subr.mxu0 %v221
    %364 = vmatpush1.msra.mxu0 %v220
    %365 = vmatprep.subr.mxu0 %v225
    %366 = vmatpush1.msra.mxu0 %v224
    %367 = vmatprep.subr.mxu0 %v229
    %368 = vmatpush1.msra.mxu0 %v228
    %369 = vmatprep.subr.mxu0 %v233
    %370 = vmatpush1.msra.mxu0 %v232
    %371 = vmatprep.subr.mxu0 %v237
    %372 = vmatpush1.msra.mxu0 %v236
    %373 = vmatprep.subr.mxu0 %v241
    %374 = vmatpush1.msra.mxu0 %v240
    %375 = vmatprep.subr.mxu0 %v245
    %376 = vmatpush1.msra.mxu0 %v244
    %377 = vmatprep.subr.mxu0 0.0
    %378 = vmatpush1.msra.mxu0 0.0
    %379 = vmatprep.subr.mxu0 0.0
    %380 = vmatpush1.msra.mxu0 0.0
    %381 = vmatprep.subr.mxu0 0.0
    %382 = vmatpush1.msra.mxu0 0.0
    %383 = vmatprep.subr.mxu0 0.0
    %384 = vmatpush1.msra.mxu0 0.0
    %385 = vmatprep.subr.mxu0 0.0
    %386 = vmatpush1.msra.mxu0 0.0
    %387 = vmatprep.subr.mxu0 0.0
    %388 = vmatpush1.msra.mxu0 0.0
    %389 = vmatprep.subr.mxu0 0.0
    %390 = vmatpush1.msra.mxu0 0.0
    %391 = vmatprep.subr.mxu0 0.0
    %392 = vmatpush1.msra.mxu0 0.0
    %393 = vmatprep.subr.mxu0 0.0
    %394 = vmatpush1.msra.mxu0 0.0
    %395 = vmatprep.subr.mxu0 0.0
    %396 = vmatpush1.msra.mxu0 0.0
    %397 = vmatprep.subr.mxu0 0.0
    %398 = vmatpush1.msra.mxu0 0.0
    %399 = vmatprep.subr.mxu0 0.0
    %400 = vmatpush1.msra.mxu0 0.0
    %401 = vmatprep.subr.mxu0 0.0
    %402 = vmatpush1.msra.mxu0 0.0
    %403 = vmatprep.subr.mxu0 0.0
    %404 = vmatpush1.msra.mxu0 0.0
    %405 = vmatprep.subr.mxu0 0.0
    %406 = vmatpush1.msra.mxu0 0.0
    %407 = vmatprep.subr.mxu0 0.0
    %408 = vmatpush1.msra.mxu0 0.0
    %409 = vmatprep.mubr.f32.mxu0 0.0
    %410 = vmatmul.mubr.f32.gmra.mrb[0].mxu0 %v180
    %v411 = vpop.f32.mrb[0].mxu0
    %v412 = vadd.f32 %v259, %v411
    %v413 = vpop.f32.mrb[0].mxu0
    %v414 = vadd.f32 %v263, %v413
    %415 = vmatprep.mubr.f32.mxu0 0.0
    %416 = vmatmul.mubr.f32.gmra.mrb[0].mxu0 %v181
    %v417 = vpop.f32.mrb[0].mxu0
    %v418 = vadd.f32 %v259, %v417
    %v419 = vpop.f32.mrb[0].mxu0
    %v420 = vadd.f32 %v263, %v419
    %421 = vdwg.mxu0
    %422 = vst [vmem:[#allocation8] sm:$0xff] %v335
    %423 = vst [vmem:[#allocation8 + $0x8] sm:$0xff] %v337
    %424 = vst [vmem:[#allocation8 + $0x10] sm:$0xff] %v412
    %425 = vst [vmem:[#allocation8 + $0x18] sm:$0xff] %v414
    %426 = vst [vmem:[#allocation8 + $0x20] sm:$0xff] %v341
    %427 = vst [vmem:[#allocation8 + $0x28] sm:$0xff] %v343
    %428 = vst [vmem:[#allocation8 + $0x30] sm:$0xff] %v418
    %429 = vst [vmem:[#allocation8 + $0x38] sm:$0xff] %v420
    // Predicated region
    $region34: #{tpu_custom_call.1} parent=1 // pred_check
      _
    $region35: #{tpu_custom_call.1} parent=1 // pred_check_branch
      %431 = sbr.rel (0) target = $region37
    $region36: #{tpu_custom_call.1} parent=1 // pred_region
      %s433 = ssub.s32 1024, 1024
      %434 = vsyncadd [#allocation4], %s433
      %s435 = sshll.u32 [#allocation8], 4
      %s436 = int_to_ptr.vmem [resolvable:$true] %s435
      %441 = dma.vmem_to_hbm [thread:$0]  %s436, 1024, %s5, [#allocation4], 512, 512, 32
    $region37: #{tpu_custom_call.1} parent=1 // pred_fallthru
      _
    // Predicated region
    $region38: #{tpu_custom_call.1} parent=1 // pred_check
      _
    $region39: #{tpu_custom_call.1} parent=1 // pred_check_branch
      %443 = sbr.rel (0) target = $region41
    $region40: #{tpu_custom_call.1} parent=1 // pred_region
      %444 = dma.done [#allocation4], 1024
    $region41: #{tpu_custom_call.1} parent=1 // pred_fallthru
      _
    %445 = vsyncpa [#allocation3], 1
    %446 = vsyncpa [#allocation6], 1
    %447 = vsyncpa [#allocation4], 1

</llo_original>
